<compile_context>
chip_gen: v7x
topology: tpu7x:2x2x1
jax: 0.10.0
libtpu: 0.0.40
codegen_flags: <defaults>
</compile_context>

<pallas_src>
import jax
import jax.numpy as jnp
from jax.experimental import pallas as pl
from jax.experimental.pallas import tpu as pltpu

FRAME = 128          # samples per frame (lane-dense input)
HIDDEN = 128         # filterbank size
DEFAULT_TM = 512     # row tile; multiple of 256 (v6e/v7x) — sweep 512/1024/2048


def _vad_kernel(frames_ref, w1_ref, b1_ref, w2_ref, b2_ref, out_ref):
    # frames_ref: (TM, FRAME)  f32  (bf16 cast fused here, not in the wrapper)
    # w1_ref:     (FRAME, HIDDEN) bf16   (resident across grid steps)
    # b1_ref:     (1, HIDDEN)  f32
    # w2_ref:     (1, HIDDEN)  bf16
    # b2_ref:     (1, 1)       f32  in SMEM (scalar read)
    # out_ref:    (1, 1, TM)   f32  (lane-dense row per tile)
    x = frames_ref[...].astype(jnp.bfloat16)                       # VPU cast, fused
    h = jnp.dot(x, w1_ref[...], preferred_element_type=jnp.float32)  # (TM, HIDDEN) f32
    h = jnp.maximum(h + b1_ref[...], 0.0)                           # bias + ReLU in f32

    # Second "matmul": contract HIDDEN of w2 (1, H) against HIDDEN of h (TM, H)
    # -> (1, TM).  The MXU emits the result already lane-dense, avoiding the
    # lane-sparse (TM, 1) layout and any transpose/relayout.
    logit = jax.lax.dot_general(
        w2_ref[...], h.astype(jnp.bfloat16),
        dimension_numbers=(((1,), (1,)), ((), ())),
        preferred_element_type=jnp.float32)                         # (1, TM) f32
    logit = logit + b2_ref[0, 0]                                    # SMEM scalar

    # mirrors ONNXSuperVADDirect's `.to(torch.float32)` on the inner output
    out_ref[...] = jax.nn.sigmoid(logit).astype(jnp.float32).reshape(out_ref.shape)


def init_params(key):
    k1, k2, k3, k4 = jax.random.split(key, 4)
    w1 = (jax.random.normal(k1, (FRAME, HIDDEN), jnp.float32) * 0.05).astype(jnp.bfloat16)
    b1 = jax.random.normal(k2, (1, HIDDEN), jnp.float32) * 0.01
    w2 = (jax.random.normal(k3, (1, HIDDEN), jnp.float32) * 0.05).astype(jnp.bfloat16)
    b2 = jax.random.normal(k4, (1, 1), jnp.float32) * 0.01
    return w1, b1, w2, b2


def super_vad_direct(audio, params, *, tm=DEFAULT_TM):
    """audio: (B, T) float waveform, T % FRAME == 0.
    Returns per-frame VAD probabilities (B, T // FRAME) in float32."""
    w1, b1, w2, b2 = params
    B, T = audio.shape
    if T % FRAME != 0:
        raise ValueError(f"T={T} must be a multiple of FRAME={FRAME}")
    n_frames = T // FRAME
    M = B * n_frames

    # Frame the waveform; keep f32 here — the bf16 cast is fused in-kernel so
    # HBM only sees one 4 B/sample read instead of a 4B read + 2B write + 2B read.
    frames = audio.reshape(M, FRAME).astype(jnp.float32)

    num_tiles = pl.cdiv(M, tm)
    m_pad = num_tiles * tm
    if m_pad != M:
        frames = jnp.pad(frames, ((0, m_pad - M), (0, 0)))

    probs = pl.pallas_call(
        _vad_kernel,
        out_shape=jax.ShapeDtypeStruct((num_tiles, 1, tm), jnp.float32),
        grid_spec=pltpu.PrefetchScalarGridSpec(
            num_scalar_prefetch=0,
            grid=(num_tiles,),
            in_specs=[
                pl.BlockSpec((tm, FRAME), lambda i: (i, 0)),        # frames (f32)
                pl.BlockSpec((FRAME, HIDDEN), lambda i: (0, 0)),    # W1 (resident, bf16)
                pl.BlockSpec((1, HIDDEN), lambda i: (0, 0)),        # b1 (f32)
                pl.BlockSpec((1, HIDDEN), lambda i: (0, 0)),        # w2 row (bf16)
                pl.BlockSpec(memory_space=pltpu.MemorySpace.SMEM),  # b2 scalar in SMEM
            ],
            # lane-dense output: last dim = tm (multiple of 128), unmasked stores
            out_specs=pl.BlockSpec((1, 1, tm), lambda i: (i, 0, 0)),
        ),
        compiler_params=pltpu.CompilerParams(
            # single "parallel" axis -> sharded across both TCs on v7x megacore
            dimension_semantics=("parallel",)),
    )(frames, w1, b1, w2, b2)

    return probs.reshape(m_pad)[:M].reshape(B, n_frames)


def _reference(audio, params):
    """Pure-JAX reference (f32 math) for a loose correctness check."""
    w1, b1, w2, b2 = params
    B, T = audio.shape
    frames = audio.reshape(B * (T // FRAME), FRAME).astype(jnp.float32)
    h = jnp.maximum(frames @ w1.astype(jnp.float32) + b1, 0.0)
    logit = h @ w2.astype(jnp.float32).T + b2[0, 0]
    return jax.nn.sigmoid(logit).reshape(B, T // FRAME)


if __name__ == "__main__":
    key = jax.random.PRNGKey(0)
    k_audio, k_params = jax.random.split(key)

    B = 2
    n_frames = 8
    T = n_frames * FRAME                     # 1024 samples
    audio = jax.random.normal(k_audio, (B, T), jnp.float32)

    params = init_params(k_params)
    out = super_vad_direct(audio, params)
    out = jax.block_until_ready(out)

    assert out.shape == (B, n_frames), out.shape
    assert out.dtype == jnp.float32, out.dtype
    assert bool(jnp.all(jnp.isfinite(out))), "non-finite output"
    assert bool(jnp.all((out >= 0.0) & (out <= 1.0))), "sigmoid range violated"

    ref = _reference(audio, params)
    assert bool(jnp.all(jnp.abs(out - ref) < 2e-2)), "mismatch vs f32 reference"

    print("KERNEL_OK")
</pallas_src>

<mosaic_0001>
module attributes {stable_mosaic.version = 11 : i64} {
  func.func @_vad_kernel(%arg0: i32, %arg1: memref<512x128xf32, #tpu.memory_space<vmem>>, %arg2: memref<128x128xbf16, #tpu.memory_space<vmem>>, %arg3: memref<1x128xf32, #tpu.memory_space<vmem>>, %arg4: memref<1x128xbf16, #tpu.memory_space<vmem>>, %arg5: memref<1x1xf32, #tpu.memory_space<smem>>, %arg6: memref<1x1x512xf32, #tpu.memory_space<vmem>>) attributes {dimension_semantics = [#tpu.dimension_semantics<parallel>], iteration_bounds = array<i64: 1>, scalar_prefetch = 0 : i64, scratch_operands = 0 : i64, tpu.core_type = #tpu.core_type<tc>, window_params = [{transform_indices = @transform_0, window_bounds = array<i64: 512, 128>}, {pipeline_mode = #tpu.pipeline_mode<synchronous>, transform_indices = @transform_1, window_bounds = array<i64: 128, 128>}, {pipeline_mode = #tpu.pipeline_mode<synchronous>, transform_indices = @transform_2, window_bounds = array<i64: 1, 128>}, {pipeline_mode = #tpu.pipeline_mode<synchronous>, transform_indices = @transform_3, window_bounds = array<i64: 1, 128>}, {transform_indices = @transform_4, window_bounds = array<i64: 1, 1>}, {transform_indices = @transform_5, window_bounds = array<i64: 1, 1, 512>}]} {
    %c0 = arith.constant 0 : index
    %c0_0 = arith.constant 0 : index
    %0 = vector.load %arg1[%c0, %c0_0] : memref<512x128xf32, #tpu.memory_space<vmem>>, vector<512x128xf32>
    %1 = arith.truncf %0 : vector<512x128xf32> to vector<512x128xbf16>
    %c0_1 = arith.constant 0 : index
    %c0_2 = arith.constant 0 : index
    %2 = vector.load %arg2[%c0_1, %c0_2] : memref<128x128xbf16, #tpu.memory_space<vmem>>, vector<128x128xbf16>
    %cst = arith.constant dense<0.000000e+00> : vector<512x128xf32>
    %3 = tpu.matmul %1, %2, %cst {dimension_numbers = #tpu.dot_dimension_numbers<[1], [0], [0], [1], [0, 0, 1, 1], [], []>} : vector<512x128xbf16>, vector<128x128xbf16>, vector<512x128xf32> -> vector<512x128xf32>
    %c0_3 = arith.constant 0 : index
    %c0_4 = arith.constant 0 : index
    %4 = vector.load %arg3[%c0_3, %c0_4] : memref<1x128xf32, #tpu.memory_space<vmem>>, vector<1x128xf32>
    %5 = vector.broadcast %4 : vector<1x128xf32> to vector<512x128xf32>
    %6 = arith.addf %3, %5 : vector<512x128xf32>
    %cst_5 = arith.constant 0.000000e+00 : f32
    %7 = vector.broadcast %cst_5 : f32 to vector<512x128xf32>
    %8 = arith.maximumf %6, %7 : vector<512x128xf32>
    %c0_6 = arith.constant 0 : index
    %c0_7 = arith.constant 0 : index
    %9 = vector.load %arg4[%c0_6, %c0_7] : memref<1x128xbf16, #tpu.memory_space<vmem>>, vector<1x128xbf16>
    %10 = arith.truncf %8 : vector<512x128xf32> to vector<512x128xbf16>
    %cst_8 = arith.constant dense<0.000000e+00> : vector<1x512xf32>
    %11 = tpu.matmul %9, %10, %cst_8 {dimension_numbers = #tpu.dot_dimension_numbers<[1], [1], [0], [0], [0, 0, 1, 0], [], []>} : vector<1x128xbf16>, vector<512x128xbf16>, vector<1x512xf32> -> vector<1x512xf32>
    %c0_9 = arith.constant 0 : index
    %c0_10 = arith.constant 0 : index
    %12 = memref.load %arg5[%c0_9, %c0_10] : memref<1x1xf32, #tpu.memory_space<smem>>
    %13 = vector.broadcast %12 : f32 to vector<1x512xf32>
    %14 = arith.addf %11, %13 : vector<1x512xf32>
    %15 = arith.negf %14 : vector<1x512xf32>
    %16 = math.exp %15 : vector<1x512xf32>
    %cst_11 = arith.constant 1.000000e+00 : f32
    %17 = vector.broadcast %cst_11 : f32 to vector<1x512xf32>
    %18 = arith.addf %17, %16 : vector<1x512xf32>
    %19 = arith.divf %17, %18 : vector<1x512xf32>
    %20 = vector.shape_cast %19 : vector<1x512xf32> to vector<1x1x512xf32>
    %c0_12 = arith.constant 0 : index
    %c0_13 = arith.constant 0 : index
    %c0_14 = arith.constant 0 : index
    %21 = vector.load %arg6[%c0_12, %c0_13, %c0_14] : memref<1x1x512xf32, #tpu.memory_space<vmem>>, vector<1x1x512xf32>
    tpu.vector_store %arg6[%c0_12, %c0_13, %c0_14], %20 {strides = array<i32>} : memref<1x1x512xf32, #tpu.memory_space<vmem>>, vector<1x1x512xf32>,
    return
  }
  func.func @transform_0(%arg0: i32) -> (i32, i32) {
    %c0_i32 = arith.constant 0 : i32
    %c0_i32_0 = arith.constant 0 : i32
    return %arg0, %c0_i32 : i32, i32
  }
  func.func @transform_1(%arg0: i32) -> (i32, i32) {
    %c0_i32 = arith.constant 0 : i32
    %c0_i32_0 = arith.constant 0 : i32
    %c0_i32_1 = arith.constant 0 : i32
    return %c0_i32, %c0_i32_0 : i32, i32
  }
  func.func @transform_2(%arg0: i32) -> (i32, i32) {
    %c0_i32 = arith.constant 0 : i32
    %c0_i32_0 = arith.constant 0 : i32
    %c0_i32_1 = arith.constant 0 : i32
    return %c0_i32, %c0_i32_0 : i32, i32
  }
  func.func @transform_3(%arg0: i32) -> (i32, i32) {
    %c0_i32 = arith.constant 0 : i32
    %c0_i32_0 = arith.constant 0 : i32
    %c0_i32_1 = arith.constant 0 : i32
    return %c0_i32, %c0_i32_0 : i32, i32
  }
  func.func @transform_4(%arg0: i32) -> (i32, i32) {
    %c0_i32 = arith.constant 0 : i32
    %c0_i32_0 = arith.constant 0 : i32
    %c0_i32_1 = arith.constant 0 : i32
    return %c0_i32, %c0_i32_0 : i32, i32
  }
  func.func @transform_5(%arg0: i32) -> (i32, i32, i32) {
    %c0_i32 = arith.constant 0 : i32
    %c0_i32_0 = arith.constant 0 : i32
    %c0_i32_1 = arith.constant 0 : i32
    return %arg0, %c0_i32, %c0_i32_0 : i32, i32, i32
  }
}

</mosaic_0001>

<llo_original>
// kernel: tpu_custom_call.1
$region0: #{tpu_custom_call.1}
  #allocation0 [shape = 'u32[]', space=smem, size = 0x4, offset = 0x4, fixed_abs, tag = 'smem constant byte address 0x4 - core index']
  #allocation1 [shape = 'u32[144,128]{1,0:T(1,128)}', space=vmem, size = 0x12000, scoped, tag = 'internal scratch']
  #allocation2 [shape = 'f32[1,1]{1,0:T(1,128)S(6)}', space=smem, size = 0x200, scoped, tag = 'scoped memory for tpu_custom_call.1']
  %s0 = inlined_call_operand.hbm [shape: f32[512,128], index: 0, kind: input, shape index: {}]
  %s1 = inlined_call_operand.hbm [shape: bf16[128,128], index: 1, kind: input, shape index: {}]
  %s2 = inlined_call_operand.vmem [shape: f32[1,128], index: 2, kind: input, shape index: {}]
  %s3 = inlined_call_operand.vmem [shape: bf16[1,128], index: 3, kind: input, shape index: {}]
  %s4 = inlined_call_operand.<no memory space> [shape: f32[1,1], index: 4, kind: input, shape index: {}]
  %s5 = inlined_call_operand.hbm [shape: f32[1,1,512], index: 5, kind: output, shape index: {}]
  %s6 = sld [smem:[#allocation0]]
  $region38: #{tpu_custom_call.1} parent=0
    _
  %s8 = ssub.s32 1, %s6
  %s9 = scalar_select 0, %s8, %s6
  %10 = sst [smem:[#allocation2]] %s4
  $region1: #{tpu_custom_call.1} parent=0
    #allocation3 [shape = 'u8[262144]{0}', space=vmem, size = 0x40000, scoped, tag = 'input window, operand 0, single buffered']
    #allocation4 [shape = 's32[1]{0}', space=sflag, size = 0x4, scoped, tag = 'scoped memory for tpu_custom_call.1']
    #allocation5 [shape = 's32[1]{0}', space=sflag, size = 0x4, scoped, tag = 'scoped memory for tpu_custom_call.1']
    #allocation6 [shape = 'u8[32768]{0}', space=vmem, size = 0x8000, scoped, tag = 'input window, operand 1, single buffered']
    #allocation7 [shape = 's32[1]{0}', space=sflag, size = 0x4, scoped, tag = 'scoped memory for tpu_custom_call.1']
    #allocation8 [shape = 'u8[2048]{0}', space=vmem, size = 0x800, scoped, tag = 'output window, operand 0, single buffered']
    %11 = vsyncpa [#allocation4], 0
    %12 = vsyncpa [#allocation7], 0
    %13 = vsyncpa [#allocation5], 0
    // Predicated region
    $region2: #{tpu_custom_call.1} parent=1 // pred_check
      _
    $region3: #{tpu_custom_call.1} parent=1 // pred_check_branch
      %15 = sbr.rel (0) target = $region5
    $region4: #{tpu_custom_call.1} parent=1 // pred_region
      %s17 = ssub.s32 8192, 8192
      %18 = vsyncadd [#allocation4], %s17
      %s19 = sshll.u32 [#allocation3], 4
      %s20 = int_to_ptr.vmem [resolvable:$true] %s19
      %25 = dma.hbm_to_vmem [thread:$0]  %s0, 8192, %s20, [#allocation4], 128, 128, 8
    $region5: #{tpu_custom_call.1} parent=1 // pred_fallthru
      _
    // Predicated region
    $region6: #{tpu_custom_call.1} parent=1 // pred_check
      _
    $region7: #{tpu_custom_call.1} parent=1 // pred_check_branch
      %27 = sbr.rel (0) target = $region9
    $region8: #{tpu_custom_call.1} parent=1 // pred_region
      %s29 = ssub.s32 1024, 1024
      %30 = vsyncadd [#allocation7], %s29
      %s31 = sshll.u32 [#allocation6], 4
      %s32 = int_to_ptr.vmem [resolvable:$true] %s31
      %37 = dma.hbm_to_vmem [thread:$0]  %s1, 1024, %s32, [#allocation7], 64, 64, 4
    $region9: #{tpu_custom_call.1} parent=1 // pred_fallthru
      _
    // Predicated region
    $region10: #{tpu_custom_call.1} parent=1 // pred_check
      _
    $region11: #{tpu_custom_call.1} parent=1 // pred_check_branch
      %39 = sbr.rel (0) target = $region13
    $region12: #{tpu_custom_call.1} parent=1 // pred_region
      _
    $region13: #{tpu_custom_call.1} parent=1 // pred_fallthru
      _
    // Predicated region
    $region14: #{tpu_custom_call.1} parent=1 // pred_check
      _
    $region15: #{tpu_custom_call.1} parent=1 // pred_check_branch
      %41 = sbr.rel (0) target = $region17
    $region16: #{tpu_custom_call.1} parent=1 // pred_region
      _
    $region17: #{tpu_custom_call.1} parent=1 // pred_fallthru
      _
    // Predicated region
    $region18: #{tpu_custom_call.1} parent=1 // pred_check
      _
    $region19: #{tpu_custom_call.1} parent=1 // pred_check_branch
      %43 = sbr.rel (0) target = $region21
    $region20: #{tpu_custom_call.1} parent=1 // pred_region
      _
    $region21: #{tpu_custom_call.1} parent=1 // pred_fallthru
      _
    // Predicated region
    $region22: #{tpu_custom_call.1} parent=1 // pred_check
      _
    $region23: #{tpu_custom_call.1} parent=1 // pred_check_branch
      %45 = sbr.rel (0) target = $region25
    $region24: #{tpu_custom_call.1} parent=1 // pred_region
      %46 = dma.done [#allocation4], 8192
    $region25: #{tpu_custom_call.1} parent=1 // pred_fallthru
      _
    // Predicated region
    $region26: #{tpu_custom_call.1} parent=1 // pred_check
      _
    $region27: #{tpu_custom_call.1} parent=1 // pred_check_branch
      %48 = sbr.rel (0) target = $region29
    $region28: #{tpu_custom_call.1} parent=1 // pred_region
      %49 = dma.done [#allocation7], 1024
    $region29: #{tpu_custom_call.1} parent=1 // pred_fallthru
      _
    %v51 = vld [vmem:[#allocation3] sm:$0xff]
    %v52 = vld [vmem:[#allocation3 + $0x8] sm:$0xff]
    %v53 = vld [vmem:[#allocation3 + $0x10] sm:$0xff]
    %v54 = vld [vmem:[#allocation3 + $0x18] sm:$0xff]
    %v55 = vld [vmem:[#allocation3 + $0x20] sm:$0xff]
    %v56 = vld [vmem:[#allocation3 + $0x28] sm:$0xff]
    %v57 = vld [vmem:[#allocation3 + $0x30] sm:$0xff]
    %v58 = vld [vmem:[#allocation3 + $0x38] sm:$0xff]
    %v59 = vld [vmem:[#allocation3 + $0x40] sm:$0xff]
    %v60 = vld [vmem:[#allocation3 + $0x48] sm:$0xff]
    %v61 = vld [vmem:[#allocation3 + $0x50] sm:$0xff]
    %v62 = vld [vmem:[#allocation3 + $0x58] sm:$0xff]
    %v63 = vld [vmem:[#allocation3 + $0x60] sm:$0xff]
    %v64 = vld [vmem:[#allocation3 + $0x68] sm:$0xff]
    %v65 = vld [vmem:[#allocation3 + $0x70] sm:$0xff]
    %v66 = vld [vmem:[#allocation3 + $0x78] sm:$0xff]
    %v67 = vld [vmem:[#allocation3 + $0x80] sm:$0xff]
    %v68 = vld [vmem:[#allocation3 + $0x88] sm:$0xff]
    %v69 = vld [vmem:[#allocation3 + $0x90] sm:$0xff]
    %v70 = vld [vmem:[#allocation3 + $0x98] sm:$0xff]
    %v71 = vld [vmem:[#allocation3 + $0xa0] sm:$0xff]
    %v72 = vld [vmem:[#allocation3 + $0xa8] sm:$0xff]
    %v73 = vld [vmem:[#allocation3 + $0xb0] sm:$0xff]
    %v74 = vld [vmem:[#allocation3 + $0xb8] sm:$0xff]
    %v75 = vld [vmem:[#allocation3 + $0xc0] sm:$0xff]
    %v76 = vld [vmem:[#allocation3 + $0xc8] sm:$0xff]
    %v77 = vld [vmem:[#allocation3 + $0xd0] sm:$0xff]
    %v78 = vld [vmem:[#allocation3 + $0xd8] sm:$0xff]
    %v79 = vld [vmem:[#allocation3 + $0xe0] sm:$0xff]
    %v80 = vld [vmem:[#allocation3 + $0xe8] sm:$0xff]
    %v81 = vld [vmem:[#allocation3 + $0xf0] sm:$0xff]
    %v82 = vld [vmem:[#allocation3 + $0xf8] sm:$0xff]
    %v83 = vld [vmem:[#allocation3 + $0x100] sm:$0xff]
    %v84 = vld [vmem:[#allocation3 + $0x108] sm:$0xff]
    %v85 = vld [vmem:[#allocation3 + $0x110] sm:$0xff]
    %v86 = vld [vmem:[#allocation3 + $0x118] sm:$0xff]
    %v87 = vld [vmem:[#allocation3 + $0x120] sm:$0xff]
    %v88 = vld [vmem:[#allocation3 + $0x128] sm:$0xff]
    %v89 = vld [vmem:[#allocation3 + $0x130] sm:$0xff]
    %v90 = vld [vmem:[#allocation3 + $0x138] sm:$0xff]
    %v91 = vld [vmem:[#allocation3 + $0x140] sm:$0xff]
    %v92 = vld [vmem:[#allocation3 + $0x148] sm:$0xff]
    %v93 = vld [vmem:[#allocation3 + $0x150] sm:$0xff]
    %v94 = vld [vmem:[#allocation3 + $0x158] sm:$0xff]
    %v95 = vld [vmem:[#allocation3 + $0x160] sm:$0xff]
    %v96 = vld [vmem:[#allocation3 + $0x168] sm:$0xff]
    %v97 = vld [vmem:[#allocation3 + $0x170] sm:$0xff]
    %v98 = vld [vmem:[#allocation3 + $0x178] sm:$0xff]
    %v99 = vld [vmem:[#allocation3 + $0x180] sm:$0xff]
    %v100 = vld [vmem:[#allocation3 + $0x188] sm:$0xff]
    %v101 = vld [vmem:[#allocation3 + $0x190] sm:$0xff]
    %v102 = vld [vmem:[#allocation3 + $0x198] sm:$0xff]
    %v103 = vld [vmem:[#allocation3 + $0x1a0] sm:$0xff]
    %v104 = vld [vmem:[#allocation3 + $0x1a8] sm:$0xff]
    %v105 = vld [vmem:[#allocation3 + $0x1b0] sm:$0xff]
    %v106 = vld [vmem:[#allocation3 + $0x1b8] sm:$0xff]
    %v107 = vld [vmem:[#allocation3 + $0x1c0] sm:$0xff]
    %v108 = vld [vmem:[#allocation3 + $0x1c8] sm:$0xff]
    %v109 = vld [vmem:[#allocation3 + $0x1d0] sm:$0xff]
    %v110 = vld [vmem:[#allocation3 + $0x1d8] sm:$0xff]
    %v111 = vld [vmem:[#allocation3 + $0x1e0] sm:$0xff]
    %v112 = vld [vmem:[#allocation3 + $0x1e8] sm:$0xff]
    %v113 = vld [vmem:[#allocation3 + $0x1f0] sm:$0xff]
    %v114 = vld [vmem:[#allocation3 + $0x1f8] sm:$0xff]
    %v115 = vpack.c.bf16 %v52, %v51
    %v116 = vpack.c.bf16 %v54, %v53
    %v117 = vpack.c.bf16 %v56, %v55
    %v118 = vpack.c.bf16 %v58, %v57
    %v119 = vpack.c.bf16 %v60, %v59
    %v120 = vpack.c.bf16 %v62, %v61
    %v121 = vpack.c.bf16 %v64, %v63
    %v122 = vpack.c.bf16 %v66, %v65
    %v123 = vpack.c.bf16 %v68, %v67
    %v124 = vpack.c.bf16 %v70, %v69
    %v125 = vpack.c.bf16 %v72, %v71
    %v126 = vpack.c.bf16 %v74, %v73
    %v127 = vpack.c.bf16 %v76, %v75
    %v128 = vpack.c.bf16 %v78, %v77
    %v129 = vpack.c.bf16 %v80, %v79
    %v130 = vpack.c.bf16 %v82, %v81
    %v131 = vpack.c.bf16 %v84, %v83
    %v132 = vpack.c.bf16 %v86, %v85
    %v133 = vpack.c.bf16 %v88, %v87
    %v134 = vpack.c.bf16 %v90, %v89
    %v135 = vpack.c.bf16 %v92, %v91
    %v136 = vpack.c.bf16 %v94, %v93
    %v137 = vpack.c.bf16 %v96, %v95
    %v138 = vpack.c.bf16 %v98, %v97
    %v139 = vpack.c.bf16 %v100, %v99
    %v140 = vpack.c.bf16 %v102, %v101
    %v141 = vpack.c.bf16 %v104, %v103
    %v142 = vpack.c.bf16 %v106, %v105
    %v143 = vpack.c.bf16 %v108, %v107
    %v144 = vpack.c.bf16 %v110, %v109
    %v145 = vpack.c.bf16 %v112, %v111
    %v146 = vpack.c.bf16 %v114, %v113
    %v147 = vld [vmem:[#allocation6] sm:$0xf]
    %v148 = vld [vmem:[#allocation6 + $0x4] sm:$0xf]
    %v149 = vld [vmem:[#allocation6 + $0x8] sm:$0xf]
    %v150 = vld [vmem:[#allocation6 + $0xc] sm:$0xf]
    %v151 = vld [vmem:[#allocation6 + $0x10] sm:$0xf]
    %v152 = vld [vmem:[#allocation6 + $0x14] sm:$0xf]
    %v153 = vld [vmem:[#allocation6 + $0x18] sm:$0xf]
    %v154 = vld [vmem:[#allocation6 + $0x1c] sm:$0xf]
    %v155 = vld [vmem:[#allocation6 + $0x20] sm:$0xf]
    %v156 = vld [vmem:[#allocation6 + $0x24] sm:$0xf]
    %v157 = vld [vmem:[#allocation6 + $0x28] sm:$0xf]
    %v158 = vld [vmem:[#allocation6 + $0x2c] sm:$0xf]
    %v159 = vld [vmem:[#allocation6 + $0x30] sm:$0xf]
    %v160 = vld [vmem:[#allocation6 + $0x34] sm:$0xf]
    %v161 = vld [vmem:[#allocation6 + $0x38] sm:$0xf]
    %v162 = vld [vmem:[#allocation6 + $0x3c] sm:$0xf]
    %v163 = vld [vmem:[%s2] sm:$0x1]
    %v165 = vlaneseq
    %v166 = vshrl.u32 %v165, 7
    %v167 = vsub.s32 0, %v166
    %v168 = vrot.slane %v163, %v167
    %v186 = vunpack.c.l.b16 %v147
    %v187 = vunpack.c.l.b16 %v148
    %v188 = vunpack.c.l.b16 %v149
    %v189 = vunpack.c.l.b16 %v150
    %v190 = vunpack.c.l.b16 %v151
    %v191 = vunpack.c.l.b16 %v152
    %v192 = vunpack.c.l.b16 %v153
    %v193 = vunpack.c.l.b16 %v154
    %v194 = vunpack.c.l.b16 %v155
    %v195 = vunpack.c.l.b16 %v156
    %v196 = vunpack.c.l.b16 %v157
    %v197 = vunpack.c.l.b16 %v158
    %v198 = vunpack.c.l.b16 %v159
    %v199 = vunpack.c.l.b16 %v160
    %v200 = vunpack.c.l.b16 %v161
    %v201 = vunpack.c.l.b16 %v162
    %v202 = vpack.c.b16 %v187, %v186
    %v203 = vpack.c.b16 %v189, %v188
    %v204 = vpack.c.b16 %v191, %v190
    %v205 = vpack.c.b16 %v193, %v192
    %v206 = vpack.c.b16 %v195, %v194
    %v207 = vpack.c.b16 %v197, %v196
    %v208 = vpack.c.b16 %v199, %v198
    %v209 = vpack.c.b16 %v201, %v200
    %218 = vmatprep.subr.bf16.mxu0 0
    %219 = vmatpush1.bf16.msra.mxu0 %v202
    %220 = vmatprep.subr.bf16.mxu0 0
    %221 = vmatpush1.bf16.msra.mxu0 %v203
    %222 = vmatprep.subr.bf16.mxu0 0
    %223 = vmatpush1.bf16.msra.mxu0 %v204
    %224 = vmatprep.subr.bf16.mxu0 0
    %225 = vmatpush1.bf16.msra.mxu0 %v205
    %226 = vmatprep.subr.bf16.mxu0 0
    %227 = vmatpush1.bf16.msra.mxu0 %v206
    %228 = vmatprep.subr.bf16.mxu0 0
    %229 = vmatpush1.bf16.msra.mxu0 %v207
    %230 = vmatprep.subr.bf16.mxu0 0
    %231 = vmatpush1.bf16.msra.mxu0 %v208
    %232 = vmatprep.subr.bf16.mxu0 0
    %233 = vmatpush1.bf16.msra.mxu0 %v209
    %234 = vmatprep.subr.bf16.mxu0 0
    %235 = vmatpush1.bf16.msra.mxu0 0
    %236 = vmatprep.subr.bf16.mxu0 0
    %237 = vmatpush1.bf16.msra.mxu0 0
    %238 = vmatprep.subr.bf16.mxu0 0
    %239 = vmatpush1.bf16.msra.mxu0 0
    %240 = vmatprep.subr.bf16.mxu0 0
    %241 = vmatpush1.bf16.msra.mxu0 0
    %242 = vmatprep.subr.bf16.mxu0 0
    %243 = vmatpush1.bf16.msra.mxu0 0
    %244 = vmatprep.subr.bf16.mxu0 0
    %245 = vmatpush1.bf16.msra.mxu0 0
    %246 = vmatprep.subr.bf16.mxu0 0
    %247 = vmatpush1.bf16.msra.mxu0 0
    %248 = vmatprep.subr.bf16.mxu0 0
    %249 = vmatpush1.bf16.msra.mxu0 0
    %250 = vmatprep.mubr.bf16.mxu0 0
    %251 = vmatmul.mubr.bf16.gmra.mrb[0].mxu0 %v115
    %v252 = vpop.f32.mrb[0].mxu0
    %v253 = vadd.f32 %v168, %v252
    %v254 = vpop.f32.mrb[0].mxu0
    %v255 = vpop.f32.mrb[0].mxu0
    %v256 = vadd.f32 %v168, %v255
    %v257 = vpop.f32.mrb[0].mxu0
    %258 = vmatprep.mubr.bf16.mxu0 0
    %259 = vmatmul.mubr.bf16.gmra.mrb[0].mxu0 %v116
    %v260 = vpop.f32.mrb[0].mxu0
    %v261 = vadd.f32 %v168, %v260
    %v262 = vpop.f32.mrb[0].mxu0
    %v263 = vpop.f32.mrb[0].mxu0
    %v264 = vadd.f32 %v168, %v263
    %v265 = vpop.f32.mrb[0].mxu0
    %266 = vmatprep.mubr.bf16.mxu0 0
    %267 = vmatmul.mubr.bf16.gmra.mrb[0].mxu0 %v117
    %v268 = vpop.f32.mrb[0].mxu0
    %v269 = vadd.f32 %v168, %v268
    %v270 = vpop.f32.mrb[0].mxu0
    %v271 = vpop.f32.mrb[0].mxu0
    %v272 = vadd.f32 %v168, %v271
    %v273 = vpop.f32.mrb[0].mxu0
    %274 = vmatprep.mubr.bf16.mxu0 0
    %275 = vmatmul.mubr.bf16.gmra.mrb[0].mxu0 %v118
    %v276 = vpop.f32.mrb[0].mxu0
    %v277 = vadd.f32 %v168, %v276
    %v278 = vpop.f32.mrb[0].mxu0
    %v279 = vpop.f32.mrb[0].mxu0
    %v280 = vadd.f32 %v168, %v279
    %v281 = vpop.f32.mrb[0].mxu0
    %282 = vmatprep.mubr.bf16.mxu0 0
    %283 = vmatmul.mubr.bf16.gmra.mrb[0].mxu0 %v119
    %v284 = vpop.f32.mrb[0].mxu0
    %v285 = vadd.f32 %v168, %v284
    %v286 = vpop.f32.mrb[0].mxu0
    %v287 = vpop.f32.mrb[0].mxu0
    %v288 = vadd.f32 %v168, %v287
    %v289 = vpop.f32.mrb[0].mxu0
    %290 = vmatprep.mubr.bf16.mxu0 0
    %291 = vmatmul.mubr.bf16.gmra.mrb[0].mxu0 %v120
    %v292 = vpop.f32.mrb[0].mxu0
    %v293 = vadd.f32 %v168, %v292
    %v294 = vpop.f32.mrb[0].mxu0
    %v295 = vpop.f32.mrb[0].mxu0
    %v296 = vadd.f32 %v168, %v295
    %v297 = vpop.f32.mrb[0].mxu0
    %298 = vmatprep.mubr.bf16.mxu0 0
    %299 = vmatmul.mubr.bf16.gmra.mrb[0].mxu0 %v121
    %v300 = vpop.f32.mrb[0].mxu0
    %v301 = vadd.f32 %v168, %v300
    %v302 = vpop.f32.mrb[0].mxu0
    %v303 = vpop.f32.mrb[0].mxu0
    %v304 = vadd.f32 %v168, %v303
    %v305 = vpop.f32.mrb[0].mxu0
    %306 = vmatprep.mubr.bf16.mxu0 0
    %307 = vmatmul.mubr.bf16.gmra.mrb[0].mxu0 %v122
    %v308 = vpop.f32.mrb[0].mxu0
    %v309 = vadd.f32 %v168, %v308
    %v310 = vpop.f32.mrb[0].mxu0
    %v311 = vpop.f32.mrb[0].mxu0
    %v312 = vadd.f32 %v168, %v311
    %v313 = vpop.f32.mrb[0].mxu0
    %314 = vmatprep.mubr.bf16.mxu0 0
    %315 = vmatmul.mubr.bf16.gmra.mrb[0].mxu0 %v123
    %v316 = vpop.f32.mrb[0].mxu0
    %v317 = vadd.f32 %v168, %v316
    %v318 = vpop.f32.mrb[0].mxu0
    %v319 = vpop.f32.mrb[0].mxu0
    %v320 = vadd.f32 %v168, %v319
    %v321 = vpop.f32.mrb[0].mxu0
    %322 = vmatprep.mubr.bf16.mxu0 0
    %323 = vmatmul.mubr.bf16.gmra.mrb[0].mxu0 %v124
    %v324 = vpop.f32.mrb[0].mxu0
    %v325 = vadd.f32 %v168, %v324
    %v326 = vpop.f32.mrb[0].mxu0
    %v327 = vpop.f32.mrb[0].mxu0
    %v328 = vadd.f32 %v168, %v327
    %v329 = vpop.f32.mrb[0].mxu0
    %330 = vmatprep.mubr.bf16.mxu0 0
    %331 = vmatmul.mubr.bf16.gmra.mrb[0].mxu0 %v125
    %v332 = vpop.f32.mrb[0].mxu0
    %v333 = vadd.f32 %v168, %v332
    %v334 = vpop.f32.mrb[0].mxu0
    %v335 = vpop.f32.mrb[0].mxu0
    %v336 = vadd.f32 %v168, %v335
    %v337 = vpop.f32.mrb[0].mxu0
    %338 = vmatprep.mubr.bf16.mxu0 0
    %339 = vmatmul.mubr.bf16.gmra.mrb[0].mxu0 %v126
    %v340 = vpop.f32.mrb[0].mxu0
    %v341 = vadd.f32 %v168, %v340
    %v342 = vpop.f32.mrb[0].mxu0
    %v343 = vpop.f32.mrb[0].mxu0
    %v344 = vadd.f32 %v168, %v343
    %v345 = vpop.f32.mrb[0].mxu0
    %346 = vmatprep.mubr.bf16.mxu0 0
    %347 = vmatmul.mubr.bf16.gmra.mrb[0].mxu0 %v127
    %v348 = vpop.f32.mrb[0].mxu0
    %v349 = vadd.f32 %v168, %v348
    %v350 = vpop.f32.mrb[0].mxu0
    %v351 = vpop.f32.mrb[0].mxu0
    %v352 = vadd.f32 %v168, %v351
    %v353 = vpop.f32.mrb[0].mxu0
    %354 = vmatprep.mubr.bf16.mxu0 0
    %355 = vmatmul.mubr.bf16.gmra.mrb[0].mxu0 %v128
    %v356 = vpop.f32.mrb[0].mxu0
    %v357 = vadd.f32 %v168, %v356
    %v358 = vpop.f32.mrb[0].mxu0
    %v359 = vpop.f32.mrb[0].mxu0
    %v360 = vadd.f32 %v168, %v359
    %v361 = vpop.f32.mrb[0].mxu0
    %362 = vmatprep.mubr.bf16.mxu0 0
    %363 = vmatmul.mubr.bf16.gmra.mrb[0].mxu0 %v129
    %v364 = vpop.f32.mrb[0].mxu0
    %v365 = vadd.f32 %v168, %v364
    %v366 = vpop.f32.mrb[0].mxu0
    %v367 = vpop.f32.mrb[0].mxu0
    %v368 = vadd.f32 %v168, %v367
    %v369 = vpop.f32.mrb[0].mxu0
    %370 = vmatprep.mubr.bf16.mxu0 0
    %371 = vmatmul.mubr.bf16.gmra.mrb[0].mxu0 %v130
    %v372 = vpop.f32.mrb[0].mxu0
    %v373 = vadd.f32 %v168, %v372
    %v374 = vpop.f32.mrb[0].mxu0
    %v375 = vpop.f32.mrb[0].mxu0
    %v376 = vadd.f32 %v168, %v375
    %v377 = vpop.f32.mrb[0].mxu0
    %378 = vmatprep.mubr.bf16.mxu0 0
    %379 = vmatmul.mubr.bf16.gmra.mrb[0].mxu0 %v131
    %v380 = vpop.f32.mrb[0].mxu0
    %v381 = vadd.f32 %v168, %v380
    %v382 = vpop.f32.mrb[0].mxu0
    %v383 = vpop.f32.mrb[0].mxu0
    %v384 = vadd.f32 %v168, %v383
    %v385 = vpop.f32.mrb[0].mxu0
    %386 = vmatprep.mubr.bf16.mxu0 0
    %387 = vmatmul.mubr.bf16.gmra.mrb[0].mxu0 %v132
    %v388 = vpop.f32.mrb[0].mxu0
    %v389 = vadd.f32 %v168, %v388
    %v390 = vpop.f32.mrb[0].mxu0
    %v391 = vpop.f32.mrb[0].mxu0
    %v392 = vadd.f32 %v168, %v391
    %v393 = vpop.f32.mrb[0].mxu0
    %394 = vmatprep.mubr.bf16.mxu0 0
    %395 = vmatmul.mubr.bf16.gmra.mrb[0].mxu0 %v133
    %v396 = vpop.f32.mrb[0].mxu0
    %v397 = vadd.f32 %v168, %v396
    %v398 = vpop.f32.mrb[0].mxu0
    %v399 = vpop.f32.mrb[0].mxu0
    %v400 = vadd.f32 %v168, %v399
    %v401 = vpop.f32.mrb[0].mxu0
    %402 = vmatprep.mubr.bf16.mxu0 0
    %403 = vmatmul.mubr.bf16.gmra.mrb[0].mxu0 %v134
    %v404 = vpop.f32.mrb[0].mxu0
    %v405 = vadd.f32 %v168, %v404
    %v406 = vpop.f32.mrb[0].mxu0
    %v407 = vpop.f32.mrb[0].mxu0
    %v408 = vadd.f32 %v168, %v407
    %v409 = vpop.f32.mrb[0].mxu0
    %410 = vmatprep.mubr.bf16.mxu0 0
    %411 = vmatmul.mubr.bf16.gmra.mrb[0].mxu0 %v135
    %v412 = vpop.f32.mrb[0].mxu0
    %v413 = vadd.f32 %v168, %v412
    %v414 = vpop.f32.mrb[0].mxu0
    %v415 = vpop.f32.mrb[0].mxu0
    %v416 = vadd.f32 %v168, %v415
    %v417 = vpop.f32.mrb[0].mxu0
    %418 = vmatprep.mubr.bf16.mxu0 0
    %419 = vmatmul.mubr.bf16.gmra.mrb[0].mxu0 %v136
    %v420 = vpop.f32.mrb[0].mxu0
    %v421 = vadd.f32 %v168, %v420
    %v422 = vpop.f32.mrb[0].mxu0
    %v423 = vpop.f32.mrb[0].mxu0
    %v424 = vadd.f32 %v168, %v423
    %v425 = vpop.f32.mrb[0].mxu0
    %426 = vmatprep.mubr.bf16.mxu0 0
    %427 = vmatmul.mubr.bf16.gmra.mrb[0].mxu0 %v137
    %v428 = vpop.f32.mrb[0].mxu0
    %v429 = vadd.f32 %v168, %v428
    %v430 = vpop.f32.mrb[0].mxu0
    %v431 = vpop.f32.mrb[0].mxu0
    %v432 = vadd.f32 %v168, %v431
    %v433 = vpop.f32.mrb[0].mxu0
    %434 = vmatprep.mubr.bf16.mxu0 0
    %435 = vmatmul.mubr.bf16.gmra.mrb[0].mxu0 %v138
    %v436 = vpop.f32.mrb[0].mxu0
    %v437 = vadd.f32 %v168, %v436
    %v438 = vpop.f32.mrb[0].mxu0
    %v439 = vpop.f32.mrb[0].mxu0
    %v440 = vadd.f32 %v168, %v439
    %v441 = vpop.f32.mrb[0].mxu0
    %442 = vmatprep.mubr.bf16.mxu0 0
    %443 = vmatmul.mubr.bf16.gmra.mrb[0].mxu0 %v139
    %v444 = vpop.f32.mrb[0].mxu0
    %v445 = vadd.f32 %v168, %v444
    %v446 = vpop.f32.mrb[0].mxu0
    %v447 = vpop.f32.mrb[0].mxu0
    %v448 = vadd.f32 %v168, %v447
    %v449 = vpop.f32.mrb[0].mxu0
    %450 = vmatprep.mubr.bf16.mxu0 0
    %451 = vmatmul.mubr.bf16.gmra.mrb[0].mxu0 %v140
    %v452 = vpop.f32.mrb[0].mxu0
    %v453 = vadd.f32 %v168, %v452
    %v454 = vpop.f32.mrb[0].mxu0
    %v455 = vpop.f32.mrb[0].mxu0
    %v456 = vadd.f32 %v168, %v455
    %v457 = vpop.f32.mrb[0].mxu0
    %458 = vmatprep.mubr.bf16.mxu0 0
    %459 = vmatmul.mubr.bf16.gmra.mrb[0].mxu0 %v141
    %v460 = vpop.f32.mrb[0].mxu0
    %v461 = vadd.f32 %v168, %v460
    %v462 = vpop.f32.mrb[0].mxu0
    %v463 = vpop.f32.mrb[0].mxu0
    %v464 = vadd.f32 %v168, %v463
    %v465 = vpop.f32.mrb[0].mxu0
    %466 = vmatprep.mubr.bf16.mxu0 0
    %467 = vmatmul.mubr.bf16.gmra.mrb[0].mxu0 %v142
    %v468 = vpop.f32.mrb[0].mxu0
    %v469 = vadd.f32 %v168, %v468
    %v470 = vpop.f32.mrb[0].mxu0
    %v471 = vpop.f32.mrb[0].mxu0
    %v472 = vadd.f32 %v168, %v471
    %v473 = vpop.f32.mrb[0].mxu0
    %474 = vmatprep.mubr.bf16.mxu0 0
    %475 = vmatmul.mubr.bf16.gmra.mrb[0].mxu0 %v143
    %v476 = vpop.f32.mrb[0].mxu0
    %v477 = vadd.f32 %v168, %v476
    %v478 = vpop.f32.mrb[0].mxu0
    %v479 = vpop.f32.mrb[0].mxu0
    %v480 = vadd.f32 %v168, %v479
    %v481 = vpop.f32.mrb[0].mxu0
    %482 = vmatprep.mubr.bf16.mxu0 0
    %483 = vmatmul.mubr.bf16.gmra.mrb[0].mxu0 %v144
    %v484 = vpop.f32.mrb[0].mxu0
    %v485 = vadd.f32 %v168, %v484
    %v486 = vpop.f32.mrb[0].mxu0
    %v487 = vpop.f32.mrb[0].mxu0
    %v488 = vadd.f32 %v168, %v487
    %v489 = vpop.f32.mrb[0].mxu0
    %490 = vmatprep.mubr.bf16.mxu0 0
    %491 = vmatmul.mubr.bf16.gmra.mrb[0].mxu0 %v145
    %v492 = vpop.f32.mrb[0].mxu0
    %v493 = vadd.f32 %v168, %v492
    %v494 = vpop.f32.mrb[0].mxu0
    %v495 = vpop.f32.mrb[0].mxu0
    %v496 = vadd.f32 %v168, %v495
    %v497 = vpop.f32.mrb[0].mxu0
    %498 = vmatprep.mubr.bf16.mxu0 0
    %499 = vmatmul.mubr.bf16.gmra.mrb[0].mxu0 %v146
    %v500 = vpop.f32.mrb[0].mxu0
    %v501 = vadd.f32 %v168, %v500
    %v502 = vpop.f32.mrb[0].mxu0
    %v503 = vpop.f32.mrb[0].mxu0
    %v504 = vadd.f32 %v168, %v503
    %v505 = vpop.f32.mrb[0].mxu0
    %506 = vdwg.mxu0
    %v507 = vmax.f32 %v253, 0.0
    %v508 = vmax.f32 %v256, 0.0
    %v509 = vmax.f32 %v261, 0.0
    %v510 = vmax.f32 %v264, 0.0
    %v511 = vmax.f32 %v269, 0.0
    %v512 = vmax.f32 %v272, 0.0
    %v513 = vmax.f32 %v277, 0.0
    %v514 = vmax.f32 %v280, 0.0
    %v515 = vmax.f32 %v285, 0.0
    %v516 = vmax.f32 %v288, 0.0
    %v517 = vmax.f32 %v293, 0.0
    %v518 = vmax.f32 %v296, 0.0
    %v519 = vmax.f32 %v301, 0.0
    %v520 = vmax.f32 %v304, 0.0
    %v521 = vmax.f32 %v309, 0.0
    %v522 = vmax.f32 %v312, 0.0
    %v523 = vmax.f32 %v317, 0.0
    %v524 = vmax.f32 %v320, 0.0
    %v525 = vmax.f32 %v325, 0.0
    %v526 = vmax.f32 %v328, 0.0
    %v527 = vmax.f32 %v333, 0.0
    %v528 = vmax.f32 %v336, 0.0
    %v529 = vmax.f32 %v341, 0.0
    %v530 = vmax.f32 %v344, 0.0
    %v531 = vmax.f32 %v349, 0.0
    %v532 = vmax.f32 %v352, 0.0
    %v533 = vmax.f32 %v357, 0.0
    %v534 = vmax.f32 %v360, 0.0
    %v535 = vmax.f32 %v365, 0.0
    %v536 = vmax.f32 %v368, 0.0
    %v537 = vmax.f32 %v373, 0.0
    %v538 = vmax.f32 %v376, 0.0
    %v539 = vmax.f32 %v381, 0.0
    %v540 = vmax.f32 %v384, 0.0
    %v541 = vmax.f32 %v389, 0.0
    %v542 = vmax.f32 %v392, 0.0
    %v543 = vmax.f32 %v397, 0.0
    %v544 = vmax.f32 %v400, 0.0
    %v545 = vmax.f32 %v405, 0.0
    %v546 = vmax.f32 %v408, 0.0
    %v547 = vmax.f32 %v413, 0.0
    %v548 = vmax.f32 %v416, 0.0
    %v549 = vmax.f32 %v421, 0.0
    %v550 = vmax.f32 %v424, 0.0
    %v551 = vmax.f32 %v429, 0.0
    %v552 = vmax.f32 %v432, 0.0
    %v553 = vmax.f32 %v437, 0.0
    %v554 = vmax.f32 %v440, 0.0
    %v555 = vmax.f32 %v445, 0.0
    %v556 = vmax.f32 %v448, 0.0
    %v557 = vmax.f32 %v453, 0.0
    %v558 = vmax.f32 %v456, 0.0
    %v559 = vmax.f32 %v461, 0.0
    %v560 = vmax.f32 %v464, 0.0
    %v561 = vmax.f32 %v469, 0.0
    %v562 = vmax.f32 %v472, 0.0
    %v563 = vmax.f32 %v477, 0.0
    %v564 = vmax.f32 %v480, 0.0
    %v565 = vmax.f32 %v485, 0.0
    %v566 = vmax.f32 %v488, 0.0
    %v567 = vmax.f32 %v493, 0.0
    %v568 = vmax.f32 %v496, 0.0
    %v569 = vmax.f32 %v501, 0.0
    %v570 = vmax.f32 %v504, 0.0
    %v571 = vld [vmem:[%s3] sm:$0x1]
    %v572 = vpack.c.bf16 %v508, %v507
    %v573 = vpack.c.bf16 %v510, %v509
    %v574 = vpack.c.bf16 %v512, %v511
    %v575 = vpack.c.bf16 %v514, %v513
    %v576 = vpack.c.bf16 %v516, %v515
    %v577 = vpack.c.bf16 %v518, %v517
    %v578 = vpack.c.bf16 %v520, %v519
    %v579 = vpack.c.bf16 %v522, %v521
    %v580 = vpack.c.bf16 %v524, %v523
    %v581 = vpack.c.bf16 %v526, %v525
    %v582 = vpack.c.bf16 %v528, %v527
    %v583 = vpack.c.bf16 %v530, %v529
    %v584 = vpack.c.bf16 %v532, %v531
    %v585 = vpack.c.bf16 %v534, %v533
    %v586 = vpack.c.bf16 %v536, %v535
    %v587 = vpack.c.bf16 %v538, %v537
    %v588 = vpack.c.bf16 %v540, %v539
    %v589 = vpack.c.bf16 %v542, %v541
    %v590 = vpack.c.bf16 %v544, %v543
    %v591 = vpack.c.bf16 %v546, %v545
    %v592 = vpack.c.bf16 %v548, %v547
    %v593 = vpack.c.bf16 %v550, %v549
    %v594 = vpack.c.bf16 %v552, %v551
    %v595 = vpack.c.bf16 %v554, %v553
    %v596 = vpack.c.bf16 %v556, %v555
    %v597 = vpack.c.bf16 %v558, %v557
    %v598 = vpack.c.bf16 %v560, %v559
    %v599 = vpack.c.bf16 %v562, %v561
    %v600 = vpack.c.bf16 %v564, %v563
    %v601 = vpack.c.bf16 %v566, %v565
    %v602 = vpack.c.bf16 %v568, %v567
    %v603 = vpack.c.bf16 %v570, %v569
    %s604 = sld [smem:[#allocation2]]
    %v605 = vstv %s604
    %606 = vmatprep.subr.bf16.mxu0 0
    %607 = vmatpush1.bf16.xpose.msra.mxu0 %v572
    %608 = vmatprep.subr.bf16.mxu0 0
    %609 = vmatpush1.bf16.xpose.msra.mxu0 %v573
    %610 = vmatprep.subr.bf16.mxu0 0
    %611 = vmatpush1.bf16.xpose.msra.mxu0 %v574
    %612 = vmatprep.subr.bf16.mxu0 0
    %613 = vmatpush1.bf16.xpose.msra.mxu0 %v575
    %614 = vmatprep.subr.bf16.mxu0 0
    %615 = vmatpush1.bf16.xpose.msra.mxu0 %v576
    %616 = vmatprep.subr.bf16.mxu0 0
    %617 = vmatpush1.bf16.xpose.msra.mxu0 %v577
    %618 = vmatprep.subr.bf16.mxu0 0
    %619 = vmatpush1.bf16.xpose.msra.mxu0 %v578
    %620 = vmatprep.subr.bf16.mxu0 0
    %621 = vmatpush1.bf16.xpose.msra.mxu0 %v579
    %622 = vmatprep.subr.bf16.mxu0 0
    %623 = vmatpush1.bf16.xpose.msra.mxu0 %v580
    %624 = vmatprep.subr.bf16.mxu0 0
    %625 = vmatpush1.bf16.xpose.msra.mxu0 %v581
    %626 = vmatprep.subr.bf16.mxu0 0
    %627 = vmatpush1.bf16.xpose.msra.mxu0 %v582
    %628 = vmatprep.subr.bf16.mxu0 0
    %629 = vmatpush1.bf16.xpose.msra.mxu0 %v583
    %630 = vmatprep.subr.bf16.mxu0 0
    %631 = vmatpush1.bf16.xpose.msra.mxu0 %v584
    %632 = vmatprep.subr.bf16.mxu0 0
    %633 = vmatpush1.bf16.xpose.msra.mxu0 %v585
    %634 = vmatprep.subr.bf16.mxu0 0
    %635 = vmatpush1.bf16.xpose.msra.mxu0 %v586
    %636 = vmatprep.subr.bf16.mxu0 0
    %637 = vmatpush1.bf16.xpose.msra.mxu0 %v587
    %638 = vmatprep.mubr.bf16.mxu0 0
    %639 = vmatmul.mubr.bf16.gmra.mrb[0].mxu0 %v571
    %v640 = vpop.f32.mrb[0].mxu0
    %v641 = vadd.f32 %v605, %v640
    %v642 = vpop.f32.mrb[0].mxu0
    %v643 = vadd.f32 %v605, %v642
    %v644 = vpop.f32.mrb[0].mxu0
    %v645 = vpop.f32.mrb[0].mxu0
    %646 = vdwg.mxu0
    %647 = vmatprep.subr.bf16.mxu0 0
    %648 = vmatpush1.bf16.xpose.msra.mxu0 %v588
    %649 = vmatprep.subr.bf16.mxu0 0
    %650 = vmatpush1.bf16.xpose.msra.mxu0 %v589
    %651 = vmatprep.subr.bf16.mxu0 0
    %652 = vmatpush1.bf16.xpose.msra.mxu0 %v590
    %653 = vmatprep.subr.bf16.mxu0 0
    %654 = vmatpush1.bf16.xpose.msra.mxu0 %v591
    %655 = vmatprep.subr.bf16.mxu0 0
    %656 = vmatpush1.bf16.xpose.msra.mxu0 %v592
    %657 = vmatprep.subr.bf16.mxu0 0
    %658 = vmatpush1.bf16.xpose.msra.mxu0 %v593
    %659 = vmatprep.subr.bf16.mxu0 0
    %660 = vmatpush1.bf16.xpose.msra.mxu0 %v594
    %661 = vmatprep.subr.bf16.mxu0 0
    %662 = vmatpush1.bf16.xpose.msra.mxu0 %v595
    %663 = vmatprep.subr.bf16.mxu0 0
    %664 = vmatpush1.bf16.xpose.msra.mxu0 %v596
    %665 = vmatprep.subr.bf16.mxu0 0
    %666 = vmatpush1.bf16.xpose.msra.mxu0 %v597
    %667 = vmatprep.subr.bf16.mxu0 0
    %668 = vmatpush1.bf16.xpose.msra.mxu0 %v598
    %669 = vmatprep.subr.bf16.mxu0 0
    %670 = vmatpush1.bf16.xpose.msra.mxu0 %v599
    %671 = vmatprep.subr.bf16.mxu0 0
    %672 = vmatpush1.bf16.xpose.msra.mxu0 %v600
    %673 = vmatprep.subr.bf16.mxu0 0
    %674 = vmatpush1.bf16.xpose.msra.mxu0 %v601
    %675 = vmatprep.subr.bf16.mxu0 0
    %676 = vmatpush1.bf16.xpose.msra.mxu0 %v602
    %677 = vmatprep.subr.bf16.mxu0 0
    %678 = vmatpush1.bf16.xpose.msra.mxu0 %v603
    %679 = vmatprep.mubr.bf16.mxu0 0
    %680 = vmatmul.mubr.bf16.gmra.mrb[0].mxu0 %v571
    %v681 = vpop.f32.mrb[0].mxu0
    %v682 = vadd.f32 %v605, %v681
    %v683 = vpop.f32.mrb[0].mxu0
    %v684 = vadd.f32 %v605, %v683
    %v685 = vpop.f32.mrb[0].mxu0
    %v686 = vpop.f32.mrb[0].mxu0
    %687 = vdwg.mxu0
    %v688 = vxor.u32 %v641, 2147483648
    %v689 = vxor.u32 %v643, 2147483648
    %v690 = vxor.u32 %v682, 2147483648
    %v691 = vxor.u32 %v684, 2147483648
    %v692 = vmul.f32 %v688, 1.442695
    %v693 = vpow.pop %v692
    %v694 = vmul.f32 %v689, 1.442695
    %v695 = vpow.pop %v694
    %v696 = vmul.f32 %v690, 1.442695
    %v697 = vpow.pop %v696
    %v698 = vmul.f32 %v691, 1.442695
    %v699 = vpow.pop %v698
    %v700 = vadd.f32 %v693, 1.0
    %v701 = vadd.f32 %v695, 1.0
    %v702 = vadd.f32 %v697, 1.0
    %v703 = vadd.f32 %v699, 1.0
    %v704 = vrcp.pop %v700
    %v705 = vmul.f32 1.0, %v704
    %v706 = vrcp.pop %v701
    %v707 = vmul.f32 1.0, %v706
    %v708 = vrcp.pop %v702
    %v709 = vmul.f32 1.0, %v708
    %v710 = vrcp.pop %v703
    %v711 = vmul.f32 1.0, %v710
    %v716 = vcombine.low %v705, %v707
    %v717 = vcombine.low %v709, %v711
    %v719 = vunpack.c.l.s4 1966171168
    %v720 = vunpack.c.0.s8 %v719
    %v721 = vlaneseq
    %v722 = vshrl.u32 %v721, 7
    %v723 = vsub.s32 %v720, %v722
    %v724 = vrot.slane %v716, %v723
    %v726 = vunpack.c.l.s4 1966171168
    %v727 = vunpack.c.0.s8 %v726
    %v728 = vlaneseq
    %v729 = vshrl.u32 %v728, 7
    %v730 = vsub.s32 %v727, %v729
    %v731 = vrot.slane %v717, %v730
    %v732 = vcombine.low %v724, %v731
    %v734 = vunpack.c.l.s4 1966171168
    %v735 = vunpack.c.0.s8 %v734
    %v736 = vlaneseq
    %v737 = vshrl.u32 %v736, 7
    %v738 = vsub.s32 %v735, %v737
    %v739 = vrot.slane %v732, %v738
    %v741 = vlaneseq
    %vm742 = vcmp.ge.s32.totalorder %v741, 0
    %vm743 = vcmp.lt.s32.totalorder %v741, 512
    %vm744 = vmand %vm742, %vm743
    %745 = vst.msk [vmem:[#allocation8] sm:$0xf] %vm744, %v739
    // Predicated region
    $region30: #{tpu_custom_call.1} parent=1 // pred_check
      _
    $region31: #{tpu_custom_call.1} parent=1 // pred_check_branch
      %747 = sbr.rel (0) target = $region33
    $region32: #{tpu_custom_call.1} parent=1 // pred_region
      %s749 = ssub.s32 64, 64
      %750 = vsyncadd [#allocation5], %s749
      %s752 = sshll.u32 [#allocation8], 4
      %s753 = int_to_ptr.vmem [resolvable:$true] %s752
      %755 = dma.vmem_to_hbm [thread:$0]  %s753, 64, %s5, [#allocation5]
    $region33: #{tpu_custom_call.1} parent=1 // pred_fallthru
      _
    // Predicated region
    $region34: #{tpu_custom_call.1} parent=1 // pred_check
      _
    $region35: #{tpu_custom_call.1} parent=1 // pred_check_branch
      %757 = sbr.rel (0) target = $region37
    $region36: #{tpu_custom_call.1} parent=1 // pred_region
      %758 = dma.done [#allocation5], 64
    $region37: #{tpu_custom_call.1} parent=1 // pred_fallthru
      _
    %759 = vsyncpa [#allocation4], 1
    %760 = vsyncpa [#allocation7], 1
    %761 = vsyncpa [#allocation5], 1

</llo_original>
